<compile_context>
chip_gen: v5e
topology: v5e:2x2
jax: 0.10.0
libtpu: 0.0.40
codegen_flags: <defaults>
</compile_context>

<pallas_src>
import functools

import numpy as np
import jax
import jax.numpy as jnp
from jax.experimental import pallas as pl
from jax.experimental.pallas import tpu as pltpu

EMBED_DIM = 32
NUM_HEADS = 4
HEAD_DIM = EMBED_DIM // NUM_HEADS    # 8
BLOCK_SIZE = 8                       # max sequence length (causal mask size)
DROPOUT_RATE = 0.1                   # identity at inference


def attention_head_kernel(x_ref, wqkv_ref, bias_ref, o_ref, *, head_dim):
    # x_ref: (BT, E) f32, wqkv_ref: (E, 3*HD) f32, bias_ref: (BT, BT) f32, o_ref: (BT, HD) f32
    x = x_ref[...]
    E = x.shape[1]

    # Single fused projection for Q, K, V (one MXU push/pop instead of three).
    qkv = jnp.dot(x, wqkv_ref[...], preferred_element_type=jnp.float32)   # (BT, 3*HD)

    # PyTorch scales by x.size(-1)**-0.5 == EMBED_DIM**-0.5 (NOT head_dim); fold into q once.
    q = qkv[:, 0 * head_dim:1 * head_dim] * (E ** -0.5)
    k = qkv[:, 1 * head_dim:2 * head_dim]
    v = qkv[:, 2 * head_dim:3 * head_dim]

    # One (BT, BT) score matrix for the whole (flattened) batch; contraction over head_dim.
    s = jax.lax.dot_general(q, k, (((1,), (1,)), ((), ())),
                            preferred_element_type=jnp.float32)           # (BT, BT)

    # Block-diagonal causal mask as a precomputed additive bias (0 keep / -inf mask).
    s = s + bias_ref[...]
    s = s - jnp.max(s, axis=-1, keepdims=True)      # diagonal always unmasked -> no NaNs
    p = jnp.exp(s)
    p = p / jnp.sum(p, axis=-1, keepdims=True)      # exact divide: free here, more accurate
    # TODO(synk): nn.Dropout(DROPOUT_RATE) on attention weights is identity in eval mode;
    #             training-mode dropout not implemented.

    o_ref[...] = jnp.dot(p, v, preferred_element_type=jnp.float32)        # (BT, HD)


def attention_head(x, wq, wk, wv):
    """x: (B, T, E) float32. wq/wk/wv: (E, head_dim) float32 (stored as in x @ W layout)."""
    B, T, E = x.shape
    HD = wq.shape[1]
    BT = B * T

    x_flat = x.reshape(BT, E)                            # batch fused into one shot
    wqkv = jnp.concatenate([wq, wk, wv], axis=1)         # (E, 3*HD) fused QKV weight

    # Trace-time constant: block-diagonal causal bias for the flattened (BT, BT) scores.
    r = np.arange(BT)
    keep = ((r[:, None] // T) == (r[None, :] // T)) & ((r[None, :] % T) <= (r[:, None] % T))
    bias = jnp.asarray(np.where(keep, 0.0, -np.inf).astype(np.float32))   # (BT, BT)

    out_flat = pl.pallas_call(
        functools.partial(attention_head_kernel, head_dim=HD),
        out_shape=jax.ShapeDtypeStruct((BT, HD), jnp.float32),
        in_specs=[
            pl.BlockSpec(memory_space=pltpu.MemorySpace.VMEM),
            pl.BlockSpec(memory_space=pltpu.MemorySpace.VMEM),
            pl.BlockSpec(memory_space=pltpu.MemorySpace.VMEM),
        ],
        out_specs=pl.BlockSpec(memory_space=pltpu.MemorySpace.VMEM),
    )(x_flat, wqkv, bias)

    return out_flat.reshape(B, T, HD)


def reference_attention_head(x, wq, wk, wv):
    """Pure-JAX f32 reference mirroring the PyTorch forward (eval mode)."""
    B, T, E = x.shape
    q = x @ wq
    k = x @ wk
    v = x @ wv
    s = jnp.einsum("btd,bsd->bts", q, k) * (E ** -0.5)
    mask = jnp.tril(jnp.ones((T, T), bool))
    s = jnp.where(mask, s, -jnp.inf)
    w = jax.nn.softmax(s, axis=-1)
    return jnp.einsum("bts,bsd->btd", w, v)


if __name__ == "__main__":
    B, T, E = 2, BLOCK_SIZE, EMBED_DIM
    key = jax.random.PRNGKey(0)
    kx, kq, kk, kv = jax.random.split(key, 4)
    s = 0.05
    x = jax.random.normal(kx, (B, T, E), jnp.float32)
    wq = s * jax.random.normal(kq, (E, HEAD_DIM), jnp.float32)
    wk = s * jax.random.normal(kk, (E, HEAD_DIM), jnp.float32)
    wv = s * jax.random.normal(kv, (E, HEAD_DIM), jnp.float32)

    out = attention_head(x, wq, wk, wv)
    out = jax.block_until_ready(out)

    ref = reference_attention_head(x, wq, wk, wv)
    assert out.shape == (B, T, HEAD_DIM)
    max_err = float(jnp.max(jnp.abs(out - ref)))
    assert jnp.allclose(out, ref, atol=1e-2, rtol=1e-2), max_err
    print("KERNEL_OK")
</pallas_src>

<mosaic_0001>
module attributes {stable_mosaic.version = 11 : i64} {
  func.func @attention_head_kernel(%arg0: memref<16x32xf32, #tpu.memory_space<vmem>>, %arg1: memref<32x24xf32, #tpu.memory_space<vmem>>, %arg2: memref<16x16xf32, #tpu.memory_space<vmem>>, %arg3: memref<16x8xf32, #tpu.memory_space<vmem>>) attributes {dimension_semantics = [], scalar_prefetch = 0 : i64, scratch_operands = 0 : i64, tpu.core_type = #tpu.core_type<tc>} {
    %c0 = arith.constant 0 : index
    %c0_0 = arith.constant 0 : index
    %0 = vector.load %arg0[%c0, %c0_0] : memref<16x32xf32, #tpu.memory_space<vmem>>, vector<16x32xf32>
    %c0_1 = arith.constant 0 : index
    %c0_2 = arith.constant 0 : index
    %1 = vector.load %arg1[%c0_1, %c0_2] : memref<32x24xf32, #tpu.memory_space<vmem>>, vector<32x24xf32>
    %cst = arith.constant dense<0.000000e+00> : vector<16x24xf32>
    %2 = tpu.matmul %0, %1, %cst {dimension_numbers = #tpu.dot_dimension_numbers<[1], [0], [0], [1], [0, 0, 1, 1], [], []>} : vector<16x32xf32>, vector<32x24xf32>, vector<16x24xf32> -> vector<16x24xf32>
    %3 = vector.extract_strided_slice %2 {offsets = [0, 0], sizes = [16, 8], strides = [1, 1]} : vector<16x24xf32> to vector<16x8xf32>
    %cst_3 = arith.constant 0.176776692 : f32
    %4 = vector.broadcast %cst_3 : f32 to vector<16x8xf32>
    %5 = arith.mulf %3, %4 : vector<16x8xf32>
    %6 = vector.extract_strided_slice %2 {offsets = [0, 8], sizes = [16, 8], strides = [1, 1]} : vector<16x24xf32> to vector<16x8xf32>
    %7 = vector.extract_strided_slice %2 {offsets = [0, 16], sizes = [16, 8], strides = [1, 1]} : vector<16x24xf32> to vector<16x8xf32>
    %cst_4 = arith.constant dense<0.000000e+00> : vector<16x16xf32>
    %8 = tpu.matmul %5, %6, %cst_4 {dimension_numbers = #tpu.dot_dimension_numbers<[1], [1], [0], [0], [0, 0, 1, 0], [], []>} : vector<16x8xf32>, vector<16x8xf32>, vector<16x16xf32> -> vector<16x16xf32>
    %c0_5 = arith.constant 0 : index
    %c0_6 = arith.constant 0 : index
    %9 = vector.load %arg2[%c0_5, %c0_6] : memref<16x16xf32, #tpu.memory_space<vmem>>, vector<16x16xf32>
    %10 = arith.addf %8, %9 : vector<16x16xf32>
    %cst_7 = arith.constant dense<0xFF800000> : vector<16xf32>
    %11 = vector.multi_reduction <maximumf>, %10, %cst_7 [1] : vector<16x16xf32> to vector<16xf32>
    %12 = vector.shape_cast %11 : vector<16xf32> to vector<16x1xf32>
    %13 = vector.broadcast %12 : vector<16x1xf32> to vector<16x16xf32>
    %14 = arith.subf %10, %13 : vector<16x16xf32>
    %15 = math.exp %14 : vector<16x16xf32>
    %cst_8 = arith.constant dense<0.000000e+00> : vector<16xf32>
    %16 = vector.multi_reduction <add>, %15, %cst_8 [1] : vector<16x16xf32> to vector<16xf32>
    %17 = vector.shape_cast %16 : vector<16xf32> to vector<16x1xf32>
    %18 = vector.broadcast %17 : vector<16x1xf32> to vector<16x16xf32>
    %19 = arith.divf %15, %18 : vector<16x16xf32>
    %cst_9 = arith.constant dense<0.000000e+00> : vector<16x8xf32>
    %20 = tpu.matmul %19, %7, %cst_9 {dimension_numbers = #tpu.dot_dimension_numbers<[1], [0], [0], [1], [0, 0, 1, 1], [], []>} : vector<16x16xf32>, vector<16x8xf32>, vector<16x8xf32> -> vector<16x8xf32>
    %c0_10 = arith.constant 0 : index
    %c0_11 = arith.constant 0 : index
    %21 = vector.load %arg3[%c0_10, %c0_11] : memref<16x8xf32, #tpu.memory_space<vmem>>, vector<16x8xf32>
    tpu.vector_store %arg3[%c0_10, %c0_11], %20 {strides = array<i32>} : memref<16x8xf32, #tpu.memory_space<vmem>>, vector<16x8xf32>,
    return
  }
}

</mosaic_0001>

<llo_original>
// kernel: tpu_custom_call.1
$region0: #{tpu_custom_call.1}
  #allocation0 [shape = 'u32[]', space=smem, size = 0x4, offset = 0x4, fixed_abs, tag = 'smem constant byte address 0x4 - core index']
  #allocation1 [shape = 'u32[72,128]{1,0:T(1,128)}', space=vmem, size = 0x9000, scoped, tag = 'internal scratch']
  %s0 = inlined_call_operand.vmem [shape: f32[16,32], index: 0, kind: input, shape index: {}]
  %s1 = inlined_call_operand.vmem [shape: f32[32,24], index: 1, kind: input, shape index: {}]
  %s2 = inlined_call_operand.vmem [shape: f32[16,16], index: 2, kind: input, shape index: {}]
  %s3 = inlined_call_operand.vmem [shape: f32[16,8], index: 3, kind: output, shape index: {}]
  %s4 = sld [smem:[#allocation0]]
  $region22: #{tpu_custom_call.1} parent=0
    _
  %s6 = ssub.s32 1, %s4
  %s7 = scalar_select 0, %s6, %s4
  // Predicated region
  $region2: #{tpu_custom_call.1} parent=0 // pred_check
    _
  $region3: #{tpu_custom_call.1} parent=0 // pred_check_branch
    %9 = sbr.rel (0) target = $region5
  $region4: #{tpu_custom_call.1} parent=0 // pred_region
    _
  $region5: #{tpu_custom_call.1} parent=0 // pred_fallthru
    _
  // Predicated region
  $region6: #{tpu_custom_call.1} parent=0 // pred_check
    _
  $region7: #{tpu_custom_call.1} parent=0 // pred_check_branch
    %11 = sbr.rel (0) target = $region9
  $region8: #{tpu_custom_call.1} parent=0 // pred_region
    _
  $region9: #{tpu_custom_call.1} parent=0 // pred_fallthru
    _
  // Predicated region
  $region10: #{tpu_custom_call.1} parent=0 // pred_check
    _
  $region11: #{tpu_custom_call.1} parent=0 // pred_check_branch
    %13 = sbr.rel (0) target = $region13
  $region12: #{tpu_custom_call.1} parent=0 // pred_region
    _
  $region13: #{tpu_custom_call.1} parent=0 // pred_fallthru
    _
  %v14 = vld [vmem:[%s0] sm:$0xff]
  %v15 = vld [vmem:[%s0 + $0x8] sm:$0xff]
  %v16 = vld [vmem:[%s1] sm:$0xff]
  %v17 = vld [vmem:[%s1 + $0x8] sm:$0xff]
  %v18 = vld [vmem:[%s1 + $0x10] sm:$0xff]
  %v19 = vld [vmem:[%s1 + $0x18] sm:$0xff]
  %vm20 = vcmask 261120
  %v22 = vsel %vm20, %v14, 0
  %v25 = vsel %vm20, %v15, 0
  %27 = vmatpush.msra.mxu0 0.0
  %28 = vmatpush.msra.mxu0 0.0
  %29 = vmatpush.msra.mxu0 0.0
  %30 = vmatpush.msra.mxu0 0.0
  %31 = vmatpush.msra.mxu0 0.0
  %32 = vmatpush.msra.mxu0 0.0
  %33 = vmatpush.msra.mxu0 0.0
  %34 = vmatpush.msra.mxu0 0.0
  %35 = vmatpush.msra.mxu0 0.0
  %36 = vmatpush.msra.mxu0 0.0
  %37 = vmatpush.msra.mxu0 0.0
  %38 = vmatpush.msra.mxu0 0.0
  %39 = vmatpush.msra.mxu0 %v19
  %40 = vmatpush.msra.mxu0 %v18
  %41 = vmatpush.msra.mxu0 %v17
  %42 = vmatpush.msra.mxu0 %v16
  %43 = vmatmul.f32.gmra.mxu0 %v22
  %v44 = vpop.f32.mrf.mxu0
  %v45 = vadd.f32 0.0, %v44
  %46 = vmatmul.f32.gmra.mxu0 %v25
  %v47 = vpop.f32.mrf.mxu0
  %v48 = vadd.f32 0.0, %v47
  %49 = vdwg.mxu0
  %v50 = vmul.f32 %v45, 0.17677669
  %v51 = vmul.f32 %v48, 0.17677669
  %v52 = vld [vmem:[%s2] sm:$0xff]
  %v53 = vld [vmem:[%s2 + $0x8] sm:$0xff]
  %56 = vrot.lane.b32.xlu0 %v45, 120
  %v57 = vpop.permute.xlu0 %56
  %58 = vrot.lane.b32.xlu0 %v48, 120
  %v59 = vpop.permute.xlu0 %58
  %vm60 = vcmask 64512
  %v62 = vsel %vm60, %v50, 0
  %v65 = vsel %vm60, %v51, 0
  %v67 = vsel %vm60, %v57, 0
  %v69 = vsel %vm60, %v59, 0
  %71 = vmatpush.xpose.msra.mxu0 0.0
  %72 = vmatpush.xpose.msra.mxu0 0.0
  %73 = vmatpush.xpose.msra.mxu0 0.0
  %74 = vmatpush.xpose.msra.mxu0 0.0
  %75 = vmatpush.xpose.msra.mxu0 0.0
  %76 = vmatpush.xpose.msra.mxu0 0.0
  %77 = vmatpush.xpose.msra.mxu0 0.0
  %78 = vmatpush.xpose.msra.mxu0 0.0
  %79 = vmatpush.xpose.msra.mxu0 0.0
  %80 = vmatpush.xpose.msra.mxu0 0.0
  %81 = vmatpush.xpose.msra.mxu0 0.0
  %82 = vmatpush.xpose.msra.mxu0 0.0
  %83 = vmatpush.xpose.msra.mxu0 0.0
  %84 = vmatpush.xpose.msra.mxu0 0.0
  %85 = vmatpush.xpose.msra.mxu0 %v69
  %86 = vmatpush.xpose.msra.mxu0 %v67
  %87 = vmatmul.f32.gmra.mxu0 %v62
  %v88 = vpop.f32.mrf.mxu0
  %v89 = vadd.f32 %v52, %v88
  %90 = vmatmul.f32.gmra.mxu0 %v65
  %v91 = vpop.f32.mrf.mxu0
  %v92 = vadd.f32 %v53, %v91
  %93 = vdwg.mxu0
  %vm94 = vcmask 130048
  %v95 = vsel %vm94, %v89, -inf
  %96 = vmax.xlane.f32.xlu0 %v95
  %v97 = vpop.xlane.xlu0 %96
  %v98 = vsel %vm94, %v92, -inf
  %99 = vmax.xlane.f32.xlu0 %v98
  %v100 = vpop.xlane.xlu0 %99
  %v101 = vsub.f32 %v89, %v97
  %v102 = vsub.f32 %v92, %v100
  %v103 = vmul.f32 %v101, 1.442695
  %v104 = vpow.pop %v103
  %v105 = vmul.f32 %v102, 1.442695
  %v106 = vpow.pop %v105
  %v107 = vsel %vm94, %v104, 0.0
  %108 = vadd.xlane.f32.xlu0 %v107
  %v109 = vpop.xlane.xlu0 %108
  %v110 = vsel %vm94, %v106, 0.0
  %111 = vadd.xlane.f32.xlu0 %v110
  %v112 = vpop.xlane.xlu0 %111
  %v113 = vrcp.pop %v109
  %v114 = vmul.f32 %v109, %v113
  %v115 = vsub.f32 1.0, %v114
  %v116 = vmul.f32 %v113, %v115
  %v117 = vadd.f32 %v113, %v116
  %vm118 = vweird.f32 %v109
  %vm119 = vweird.f32 %v113
  %vm120 = vmor %vm118, %vm119
  %v121 = vsel %vm120, %v113, %v117
  %v122 = vand.u32 2147483647, %v109
  %vm123 = vcmp.eq.f32.partialorder %v122, 8.507059e+37
  %v124 = vand.u32 %v109, 2147483648
  %v125 = vor.u32 1.1754944e-38, %v124
  %v126 = vsel %vm123, %v125, %v121
  %v127 = vmul.f32 %v104, %v126
  %v128 = vrcp.pop %v112
  %v129 = vmul.f32 %v112, %v128
  %v130 = vsub.f32 1.0, %v129
  %v131 = vmul.f32 %v128, %v130
  %v132 = vadd.f32 %v128, %v131
  %vm133 = vweird.f32 %v112
  %vm134 = vweird.f32 %v128
  %vm135 = vmor %vm133, %vm134
  %v136 = vsel %vm135, %v128, %v132
  %v137 = vand.u32 2147483647, %v112
  %vm138 = vcmp.eq.f32.partialorder %v137, 8.507059e+37
  %v139 = vand.u32 %v112, 2147483648
  %v140 = vor.u32 1.1754944e-38, %v139
  %v141 = vsel %vm138, %v140, %v136
  %v142 = vmul.f32 %v106, %v141
  %143 = vrot.lane.b32.xlu0 %v45, 112
  %v144 = vpop.permute.xlu0 %143
  %145 = vrot.lane.b32.xlu0 %v48, 112
  %v146 = vpop.permute.xlu0 %145
  %v150 = vsel %vm94, %v127, 0
  %v153 = vsel %vm94, %v142, 0
  %155 = vmatpush.msra.mxu0 0.0
  %156 = vmatpush.msra.mxu0 0.0
  %157 = vmatpush.msra.mxu0 0.0
  %158 = vmatpush.msra.mxu0 0.0
  %159 = vmatpush.msra.mxu0 0.0
  %160 = vmatpush.msra.mxu0 0.0
  %161 = vmatpush.msra.mxu0 0.0
  %162 = vmatpush.msra.mxu0 0.0
  %163 = vmatpush.msra.mxu0 0.0
  %164 = vmatpush.msra.mxu0 0.0
  %165 = vmatpush.msra.mxu0 0.0
  %166 = vmatpush.msra.mxu0 0.0
  %167 = vmatpush.msra.mxu0 0.0
  %168 = vmatpush.msra.mxu0 0.0
  %169 = vmatpush.msra.mxu0 %v146
  %170 = vmatpush.msra.mxu0 %v144
  %171 = vmatmul.f32.gmra.mxu0 %v150
  %v172 = vpop.f32.mrf.mxu0
  %v173 = vadd.f32 0.0, %v172
  %174 = vmatmul.f32.gmra.mxu0 %v153
  %v175 = vpop.f32.mrf.mxu0
  %v176 = vadd.f32 0.0, %v175
  %177 = vdwg.mxu0
  %178 = vst.msk [vmem:[%s3] sm:$0xff] %vm60, %v173
  %179 = vst.msk [vmem:[%s3 + $0x8] sm:$0xff] %vm60, %v176
  // Predicated region
  $region14: #{tpu_custom_call.1} parent=0 // pred_check
    _
  $region15: #{tpu_custom_call.1} parent=0 // pred_check_branch
    %181 = sbr.rel (0) target = $region17
  $region16: #{tpu_custom_call.1} parent=0 // pred_region
    _
  $region17: #{tpu_custom_call.1} parent=0 // pred_fallthru
    _
  // Predicated region
  $region18: #{tpu_custom_call.1} parent=0 // pred_check
    _
  $region19: #{tpu_custom_call.1} parent=0 // pred_check_branch
    %183 = sbr.rel (0) target = $region21
  $region20: #{tpu_custom_call.1} parent=0 // pred_region
    _
  $region21: #{tpu_custom_call.1} parent=0 // pred_fallthru
    _

</llo_original>
